<compile_context>
chip_gen: v6e
topology: v6e:2x2x1
jax: 0.10.0
libtpu: 0.0.40
codegen_flags: <defaults>
</compile_context>

<pallas_src>
import jax
import jax.numpy as jnp
from jax.experimental import pallas as pl
from jax.experimental.pallas import tpu as pltpu


HIDDEN = 64
N_OUT = 2
N_HIDDEN_MATMULS = 4  # layers 2..5


def _mlp_kernel(x_ref, w1_ref, wh_ref, bh_ref, w6_ref, b6_ref, out_ref):
    """One batch tile; batch lives on the lane axis.

    x_ref   : (1, TB)      lane-dense input tile
    w1_ref  : (64, 1)      first-layer weight column (PyTorch (out, in))
    wh_ref  : (4, 64, 64)  hidden-layer weights, (out, in) layout
    bh_ref  : (5, 64, 1)   biases of layers 1..5
    w6_ref  : (64, 2)      last-layer weight, (in, out) layout
    b6_ref  : (1, 2)
    out_ref : (2, TB)      row 0 = lambd, row 1 = nu
    """
    x = x_ref[...]                                            # (1, TB)

    # Layer 1 (1 -> 64): K=1 matmul replaced by a VPU broadcast multiply.
    h = jnp.maximum(w1_ref[...] * x + bh_ref[0], 0.0)         # (64, TB)

    # Layers 2..5 (64 -> 64): MXU matmuls, batch (N) on the lane axis.
    for k in range(N_HIDDEN_MATMULS):
        h = jnp.dot(wh_ref[k], h, preferred_element_type=jnp.float32) + bh_ref[k + 1]
        h = jnp.maximum(h, 0.0)                               # (64, TB)

    # Layer 6 (64 -> 2): N=2 would waste an MXU pass; VPU mul + sublane reduce.
    w6 = w6_ref[...]                                          # (64, 2)
    b6 = b6_ref[...]                                          # (1, 2)
    y0 = jnp.sum(h * w6[:, 0:1], axis=0, keepdims=True) + b6[:, 0:1]          # (1, TB)
    y1 = jnp.sum(h * w6[:, N_OUT - 1:N_OUT], axis=0, keepdims=True) \
        + b6[:, N_OUT - 1:N_OUT]                                              # (1, TB)

    out_ref[...] = jnp.concatenate([jnp.maximum(y0, 0.0), y1], axis=0)        # (2, TB)


def net_lambd_forward(x, params, *, tile_b=None):
    """x: (B, 1) float32.  Returns (lambd, nu), each (B, 1) float32."""
    B = x.shape[0]
    if tile_b is None:
        # Lane-dense tile: multiple of 128, capped at 512, no larger than the
        # 128-rounded batch (avoids padding small batches up to a huge tile).
        tile_b = min(512, ((B + 127) // 128) * 128)
    assert tile_b % 128 == 0, "tile_b must be a multiple of 128 (lane width)"

    w1, b1, w2, b2, w3, b3, w4, b4, w5, b5, w6, b6 = params

    # Pack params for the batch-on-lanes layout (done once, outside the kernel).
    w1k = w1.reshape(HIDDEN, 1)                    # (1, 64)  -> (64, 1)
    wh = jnp.stack([w2.T, w3.T, w4.T, w5.T])       # (4, 64, 64), (out, in)
    bh = jnp.stack([b1, b2, b3, b4, b5]).reshape(5, HIDDEN, 1)
    # w6 stays (64, 2); b6 stays (1, 2).

    # Lane-dense input: (B, 1) -> (1, B), pad batch to a multiple of tile_b.
    b_pad = ((B + tile_b - 1) // tile_b) * tile_b
    xl = x.reshape(1, B)
    if b_pad != B:
        xl = jnp.pad(xl, ((0, 0), (0, b_pad - B)))
    grid = (b_pad // tile_b,)

    def const_spec(shape):
        return pl.BlockSpec(shape, lambda i, _n=len(shape): (0,) * _n)

    out = pl.pallas_call(
        _mlp_kernel,
        grid_spec=pl.GridSpec(
            grid=grid,
            in_specs=[
                pl.BlockSpec((1, tile_b), lambda i: (0, i)),   # x (lane-dense)
                const_spec(w1k.shape),
                const_spec(wh.shape),
                const_spec(bh.shape),
                const_spec(w6.shape),
                const_spec(b6.shape),
            ],
            out_specs=pl.BlockSpec((N_OUT, tile_b), lambda i: (0, i)),
        ),
        out_shape=jax.ShapeDtypeStruct((N_OUT, b_pad), jnp.float32),
        compiler_params=pltpu.CompilerParams(
            dimension_semantics=("parallel",)),
    )(xl, w1k, wh, bh, w6, b6)

    out = out[:, :B]                       # drop batch padding
    lambd = out[0:1, :].T                  # (B, 1)
    nu = out[N_OUT - 1:N_OUT, :].T         # (B, 1)
    return lambd, nu


def init_params(key):
    """Deterministic init matching PyTorch nn.Linear default: U(-1/sqrt(fan_in), +)."""
    dims = [(1, HIDDEN), (HIDDEN, HIDDEN), (HIDDEN, HIDDEN),
            (HIDDEN, HIDDEN), (HIDDEN, HIDDEN), (HIDDEN, N_OUT)]
    params = []
    for (fan_in, fan_out) in dims:
        key, kw, kb = jax.random.split(key, 3)
        bound = 1.0 / (fan_in ** 0.5)
        w = jax.random.uniform(kw, (fan_in, fan_out), jnp.float32, -bound, bound)
        b = jax.random.uniform(kb, (1, fan_out), jnp.float32, -bound, bound)
        params += [w, b]
    return tuple(params)


def _reference(x, params):
    w1, b1, w2, b2, w3, b3, w4, b4, w5, b5, w6, b6 = params
    h = x
    for w, b in [(w1, b1), (w2, b2), (w3, b3), (w4, b4), (w5, b5)]:
        h = jnp.maximum(h @ w + b, 0.0)
    y = h @ w6 + b6
    return jnp.maximum(y[:, 0:1], 0.0), y[:, N_OUT - 1:N_OUT]


if __name__ == "__main__":
    key = jax.random.PRNGKey(0)
    kx, kp = jax.random.split(key)

    B = 256
    x = jax.random.normal(kx, (B, 1), dtype=jnp.float32)
    params = init_params(kp)

    lambd, nu = net_lambd_forward(x, params)
    lambd, nu = jax.block_until_ready((lambd, nu))

    lambd_ref, nu_ref = _reference(x, params)
    assert lambd.shape == (B, 1) and nu.shape == (B, 1)
    assert jnp.allclose(lambd, lambd_ref, atol=1e-4, rtol=1e-4)
    assert jnp.allclose(nu, nu_ref, atol=1e-4, rtol=1e-4)

    print("KERNEL_OK")
</pallas_src>

<mosaic_0001>
module attributes {stable_mosaic.version = 11 : i64} {
  func.func @_mlp_kernel(%arg0: i32, %arg1: memref<1x256xf32, #tpu.memory_space<vmem>>, %arg2: memref<64x1xf32, #tpu.memory_space<vmem>>, %arg3: memref<4x64x64xf32, #tpu.memory_space<vmem>>, %arg4: memref<5x64x1xf32, #tpu.memory_space<vmem>>, %arg5: memref<64x2xf32, #tpu.memory_space<vmem>>, %arg6: memref<1x2xf32, #tpu.memory_space<vmem>>, %arg7: memref<2x256xf32, #tpu.memory_space<vmem>>) attributes {dimension_semantics = [#tpu.dimension_semantics<parallel>], iteration_bounds = array<i64: 1>, scalar_prefetch = 0 : i64, scratch_operands = 0 : i64, tpu.core_type = #tpu.core_type<tc>, window_params = [{transform_indices = @transform_0, window_bounds = array<i64: 1, 256>}, {pipeline_mode = #tpu.pipeline_mode<synchronous>, transform_indices = @transform_1, window_bounds = array<i64: 64, 1>}, {pipeline_mode = #tpu.pipeline_mode<synchronous>, transform_indices = @transform_2, window_bounds = array<i64: 4, 64, 64>}, {pipeline_mode = #tpu.pipeline_mode<synchronous>, transform_indices = @transform_3, window_bounds = array<i64: 5, 64, 1>}, {pipeline_mode = #tpu.pipeline_mode<synchronous>, transform_indices = @transform_4, window_bounds = array<i64: 64, 2>}, {pipeline_mode = #tpu.pipeline_mode<synchronous>, transform_indices = @transform_5, window_bounds = array<i64: 1, 2>}, {transform_indices = @transform_6, window_bounds = array<i64: 2, 256>}]} {
    %c0 = arith.constant 0 : index
    %c0_0 = arith.constant 0 : index
    %0 = vector.load %arg1[%c0, %c0_0] : memref<1x256xf32, #tpu.memory_space<vmem>>, vector<1x256xf32>
    %c0_1 = arith.constant 0 : index
    %c0_2 = arith.constant 0 : index
    %1 = vector.load %arg2[%c0_1, %c0_2] : memref<64x1xf32, #tpu.memory_space<vmem>>, vector<64x1xf32>
    %2 = vector.broadcast %1 : vector<64x1xf32> to vector<64x256xf32>
    %3 = vector.broadcast %0 : vector<1x256xf32> to vector<64x256xf32>
    %4 = arith.mulf %2, %3 : vector<64x256xf32>
    %c0_3 = arith.constant 0 : index
    %c0_4 = arith.constant 0 : index
    %c0_5 = arith.constant 0 : index
    %5 = vector.load %arg4[%c0_3, %c0_4, %c0_5] : memref<5x64x1xf32, #tpu.memory_space<vmem>>, vector<1x64x1xf32>
    %6 = vector.shape_cast %5 : vector<1x64x1xf32> to vector<64x1xf32>
    %7 = vector.broadcast %6 : vector<64x1xf32> to vector<64x256xf32>
    %8 = arith.addf %4, %7 : vector<64x256xf32>
    %cst = arith.constant 0.000000e+00 : f32
    %9 = vector.broadcast %cst : f32 to vector<64x256xf32>
    %10 = arith.maximumf %8, %9 : vector<64x256xf32>
    %c0_6 = arith.constant 0 : index
    %c0_7 = arith.constant 0 : index
    %c0_8 = arith.constant 0 : index
    %11 = vector.load %arg3[%c0_6, %c0_7, %c0_8] : memref<4x64x64xf32, #tpu.memory_space<vmem>>, vector<1x64x64xf32>
    %12 = vector.shape_cast %11 : vector<1x64x64xf32> to vector<64x64xf32>
    %cst_9 = arith.constant dense<0.000000e+00> : vector<64x256xf32>
    %13 = tpu.matmul %12, %10, %cst_9 {dimension_numbers = #tpu.dot_dimension_numbers<[1], [0], [0], [1], [0, 0, 1, 1], [], []>} : vector<64x64xf32>, vector<64x256xf32>, vector<64x256xf32> -> vector<64x256xf32>
    %c1 = arith.constant 1 : index
    %c0_10 = arith.constant 0 : index
    %c0_11 = arith.constant 0 : index
    %14 = vector.load %arg4[%c1, %c0_10, %c0_11] : memref<5x64x1xf32, #tpu.memory_space<vmem>>, vector<1x64x1xf32>
    %15 = vector.shape_cast %14 : vector<1x64x1xf32> to vector<64x1xf32>
    %16 = vector.broadcast %15 : vector<64x1xf32> to vector<64x256xf32>
    %17 = arith.addf %13, %16 : vector<64x256xf32>
    %cst_12 = arith.constant 0.000000e+00 : f32
    %18 = vector.broadcast %cst_12 : f32 to vector<64x256xf32>
    %19 = arith.maximumf %17, %18 : vector<64x256xf32>
    %c1_13 = arith.constant 1 : index
    %c0_14 = arith.constant 0 : index
    %c0_15 = arith.constant 0 : index
    %20 = vector.load %arg3[%c1_13, %c0_14, %c0_15] : memref<4x64x64xf32, #tpu.memory_space<vmem>>, vector<1x64x64xf32>
    %21 = vector.shape_cast %20 : vector<1x64x64xf32> to vector<64x64xf32>
    %cst_16 = arith.constant dense<0.000000e+00> : vector<64x256xf32>
    %22 = tpu.matmul %21, %19, %cst_16 {dimension_numbers = #tpu.dot_dimension_numbers<[1], [0], [0], [1], [0, 0, 1, 1], [], []>} : vector<64x64xf32>, vector<64x256xf32>, vector<64x256xf32> -> vector<64x256xf32>
    %c2 = arith.constant 2 : index
    %c0_17 = arith.constant 0 : index
    %c0_18 = arith.constant 0 : index
    %23 = vector.load %arg4[%c2, %c0_17, %c0_18] : memref<5x64x1xf32, #tpu.memory_space<vmem>>, vector<1x64x1xf32>
    %24 = vector.shape_cast %23 : vector<1x64x1xf32> to vector<64x1xf32>
    %25 = vector.broadcast %24 : vector<64x1xf32> to vector<64x256xf32>
    %26 = arith.addf %22, %25 : vector<64x256xf32>
    %cst_19 = arith.constant 0.000000e+00 : f32
    %27 = vector.broadcast %cst_19 : f32 to vector<64x256xf32>
    %28 = arith.maximumf %26, %27 : vector<64x256xf32>
    %c2_20 = arith.constant 2 : index
    %c0_21 = arith.constant 0 : index
    %c0_22 = arith.constant 0 : index
    %29 = vector.load %arg3[%c2_20, %c0_21, %c0_22] : memref<4x64x64xf32, #tpu.memory_space<vmem>>, vector<1x64x64xf32>
    %30 = vector.shape_cast %29 : vector<1x64x64xf32> to vector<64x64xf32>
    %cst_23 = arith.constant dense<0.000000e+00> : vector<64x256xf32>
    %31 = tpu.matmul %30, %28, %cst_23 {dimension_numbers = #tpu.dot_dimension_numbers<[1], [0], [0], [1], [0, 0, 1, 1], [], []>} : vector<64x64xf32>, vector<64x256xf32>, vector<64x256xf32> -> vector<64x256xf32>
    %c3 = arith.constant 3 : index
    %c0_24 = arith.constant 0 : index
    %c0_25 = arith.constant 0 : index
    %32 = vector.load %arg4[%c3, %c0_24, %c0_25] : memref<5x64x1xf32, #tpu.memory_space<vmem>>, vector<1x64x1xf32>
    %33 = vector.shape_cast %32 : vector<1x64x1xf32> to vector<64x1xf32>
    %34 = vector.broadcast %33 : vector<64x1xf32> to vector<64x256xf32>
    %35 = arith.addf %31, %34 : vector<64x256xf32>
    %cst_26 = arith.constant 0.000000e+00 : f32
    %36 = vector.broadcast %cst_26 : f32 to vector<64x256xf32>
    %37 = arith.maximumf %35, %36 : vector<64x256xf32>
    %c3_27 = arith.constant 3 : index
    %c0_28 = arith.constant 0 : index
    %c0_29 = arith.constant 0 : index
    %38 = vector.load %arg3[%c3_27, %c0_28, %c0_29] : memref<4x64x64xf32, #tpu.memory_space<vmem>>, vector<1x64x64xf32>
    %39 = vector.shape_cast %38 : vector<1x64x64xf32> to vector<64x64xf32>
    %cst_30 = arith.constant dense<0.000000e+00> : vector<64x256xf32>
    %40 = tpu.matmul %39, %37, %cst_30 {dimension_numbers = #tpu.dot_dimension_numbers<[1], [0], [0], [1], [0, 0, 1, 1], [], []>} : vector<64x64xf32>, vector<64x256xf32>, vector<64x256xf32> -> vector<64x256xf32>
    %c4 = arith.constant 4 : index
    %c0_31 = arith.constant 0 : index
    %c0_32 = arith.constant 0 : index
    %41 = vector.load %arg4[%c4, %c0_31, %c0_32] : memref<5x64x1xf32, #tpu.memory_space<vmem>>, vector<1x64x1xf32>
    %42 = vector.shape_cast %41 : vector<1x64x1xf32> to vector<64x1xf32>
    %43 = vector.broadcast %42 : vector<64x1xf32> to vector<64x256xf32>
    %44 = arith.addf %40, %43 : vector<64x256xf32>
    %cst_33 = arith.constant 0.000000e+00 : f32
    %45 = vector.broadcast %cst_33 : f32 to vector<64x256xf32>
    %46 = arith.maximumf %44, %45 : vector<64x256xf32>
    %c0_34 = arith.constant 0 : index
    %c0_35 = arith.constant 0 : index
    %47 = vector.load %arg5[%c0_34, %c0_35] : memref<64x2xf32, #tpu.memory_space<vmem>>, vector<64x2xf32>
    %c0_36 = arith.constant 0 : index
    %c0_37 = arith.constant 0 : index
    %48 = vector.load %arg6[%c0_36, %c0_37] : memref<1x2xf32, #tpu.memory_space<vmem>>, vector<1x2xf32>
    %49 = vector.extract_strided_slice %47 {offsets = [0, 0], sizes = [64, 1], strides = [1, 1]} : vector<64x2xf32> to vector<64x1xf32>
    %50 = vector.broadcast %49 : vector<64x1xf32> to vector<64x256xf32>
    %51 = arith.mulf %46, %50 : vector<64x256xf32>
    %cst_38 = arith.constant dense<0.000000e+00> : vector<256xf32>
    %52 = vector.multi_reduction <add>, %51, %cst_38 [0] : vector<64x256xf32> to vector<256xf32>
    %53 = vector.shape_cast %52 : vector<256xf32> to vector<1x256xf32>
    %54 = vector.extract_strided_slice %48 {offsets = [0, 0], sizes = [1, 1], strides = [1, 1]} : vector<1x2xf32> to vector<1x1xf32>
    %55 = vector.broadcast %54 : vector<1x1xf32> to vector<1x256xf32>
    %56 = arith.addf %53, %55 : vector<1x256xf32>
    %57 = vector.extract_strided_slice %47 {offsets = [0, 1], sizes = [64, 1], strides = [1, 1]} : vector<64x2xf32> to vector<64x1xf32>
    %58 = vector.broadcast %57 : vector<64x1xf32> to vector<64x256xf32>
    %59 = arith.mulf %46, %58 : vector<64x256xf32>
    %cst_39 = arith.constant dense<0.000000e+00> : vector<256xf32>
    %60 = vector.multi_reduction <add>, %59, %cst_39 [0] : vector<64x256xf32> to vector<256xf32>
    %61 = vector.shape_cast %60 : vector<256xf32> to vector<1x256xf32>
    %62 = vector.extract_strided_slice %48 {offsets = [0, 1], sizes = [1, 1], strides = [1, 1]} : vector<1x2xf32> to vector<1x1xf32>
    %63 = vector.broadcast %62 : vector<1x1xf32> to vector<1x256xf32>
    %64 = arith.addf %61, %63 : vector<1x256xf32>
    %cst_40 = arith.constant 0.000000e+00 : f32
    %65 = vector.broadcast %cst_40 : f32 to vector<1x256xf32>
    %66 = arith.maximumf %56, %65 : vector<1x256xf32>
    %67 = tpu.concatenate %66, %64 in 0 : vector<1x256xf32>, vector<1x256xf32> -> vector<2x256xf32>
    %c0_41 = arith.constant 0 : index
    %c0_42 = arith.constant 0 : index
    %68 = vector.load %arg7[%c0_41, %c0_42] : memref<2x256xf32, #tpu.memory_space<vmem>>, vector<2x256xf32>
    tpu.vector_store %arg7[%c0_41, %c0_42], %67 {strides = array<i32>} : memref<2x256xf32, #tpu.memory_space<vmem>>, vector<2x256xf32>,
    return
  }
  func.func @transform_0(%arg0: i32) -> (i32, i32) {
    %c0_i32 = arith.constant 0 : i32
    %c0_i32_0 = arith.constant 0 : i32
    return %c0_i32, %arg0 : i32, i32
  }
  func.func @transform_1(%arg0: i32) -> (i32, i32) {
    %c0_i32 = arith.constant 0 : i32
    %c0_i32_0 = arith.constant 0 : i32
    %c0_i32_1 = arith.constant 0 : i32
    return %c0_i32, %c0_i32_0 : i32, i32
  }
  func.func @transform_2(%arg0: i32) -> (i32, i32, i32) {
    %c0_i32 = arith.constant 0 : i32
    %c0_i32_0 = arith.constant 0 : i32
    %c0_i32_1 = arith.constant 0 : i32
    %c0_i32_2 = arith.constant 0 : i32
    return %c0_i32, %c0_i32_0, %c0_i32_1 : i32, i32, i32
  }
  func.func @transform_3(%arg0: i32) -> (i32, i32, i32) {
    %c0_i32 = arith.constant 0 : i32
    %c0_i32_0 = arith.constant 0 : i32
    %c0_i32_1 = arith.constant 0 : i32
    %c0_i32_2 = arith.constant 0 : i32
    return %c0_i32, %c0_i32_0, %c0_i32_1 : i32, i32, i32
  }
  func.func @transform_4(%arg0: i32) -> (i32, i32) {
    %c0_i32 = arith.constant 0 : i32
    %c0_i32_0 = arith.constant 0 : i32
    %c0_i32_1 = arith.constant 0 : i32
    return %c0_i32, %c0_i32_0 : i32, i32
  }
  func.func @transform_5(%arg0: i32) -> (i32, i32) {
    %c0_i32 = arith.constant 0 : i32
    %c0_i32_0 = arith.constant 0 : i32
    %c0_i32_1 = arith.constant 0 : i32
    return %c0_i32, %c0_i32_0 : i32, i32
  }
  func.func @transform_6(%arg0: i32) -> (i32, i32) {
    %c0_i32 = arith.constant 0 : i32
    %c0_i32_0 = arith.constant 0 : i32
    return %c0_i32, %arg0 : i32, i32
  }
}

</mosaic_0001>

<llo_original>
// kernel: tpu_custom_call.1
$region0: #{tpu_custom_call.1}
  #allocation0 [shape = 'u32[]', space=smem, size = 0x4, offset = 0x4, fixed_abs, tag = 'smem constant byte address 0x4 - core index']
  #allocation1 [shape = 'u32[144,128]{1,0:T(1,128)}', space=vmem, size = 0x12000, scoped, tag = 'internal scratch']
  %s0 = inlined_call_operand.vmem [shape: f32[1,256], index: 0, kind: input, shape index: {}]
  %s1 = inlined_call_operand.vmem [shape: f32[64,1], index: 1, kind: input, shape index: {}]
  %s2 = inlined_call_operand.vmem [shape: f32[4,64,64], index: 2, kind: input, shape index: {}]
  %s3 = inlined_call_operand.vmem [shape: f32[5,64,1], index: 3, kind: input, shape index: {}]
  %s4 = inlined_call_operand.vmem [shape: f32[64,2], index: 4, kind: input, shape index: {}]
  %s5 = inlined_call_operand.vmem [shape: f32[1,2], index: 5, kind: input, shape index: {}]
  %s6 = inlined_call_operand.hbm [shape: f32[2,256], index: 6, kind: output, shape index: {}]
  %s7 = sld [smem:[#allocation0]]
  $region34: #{tpu_custom_call.1} parent=0
    _
  %s9 = ssub.s32 1, %s7
  %s10 = scalar_select 0, %s9, %s7
  $region1: #{tpu_custom_call.1} parent=0
    #allocation2 [shape = 'u8[2048]{0}', space=vmem, size = 0x800, scoped, tag = 'output window, operand 0, single buffered']
    #allocation3 [shape = 's32[1]{0}', space=sflag, size = 0x4, scoped, tag = 'scoped memory for tpu_custom_call.1']
    %11 = vsyncpa [#allocation3], 0
    // Predicated region
    $region2: #{tpu_custom_call.1} parent=1 // pred_check
      _
    $region3: #{tpu_custom_call.1} parent=1 // pred_check_branch
      %13 = sbr.rel (0) target = $region5
    $region4: #{tpu_custom_call.1} parent=1 // pred_region
      _
    $region5: #{tpu_custom_call.1} parent=1 // pred_fallthru
      _
    // Predicated region
    $region6: #{tpu_custom_call.1} parent=1 // pred_check
      _
    $region7: #{tpu_custom_call.1} parent=1 // pred_check_branch
      %15 = sbr.rel (0) target = $region9
    $region8: #{tpu_custom_call.1} parent=1 // pred_region
      _
    $region9: #{tpu_custom_call.1} parent=1 // pred_fallthru
      _
    // Predicated region
    $region10: #{tpu_custom_call.1} parent=1 // pred_check
      _
    $region11: #{tpu_custom_call.1} parent=1 // pred_check_branch
      %17 = sbr.rel (0) target = $region13
    $region12: #{tpu_custom_call.1} parent=1 // pred_region
      _
    $region13: #{tpu_custom_call.1} parent=1 // pred_fallthru
      _
    // Predicated region
    $region14: #{tpu_custom_call.1} parent=1 // pred_check
      _
    $region15: #{tpu_custom_call.1} parent=1 // pred_check_branch
      %19 = sbr.rel (0) target = $region17
    $region16: #{tpu_custom_call.1} parent=1 // pred_region
      _
    $region17: #{tpu_custom_call.1} parent=1 // pred_fallthru
      _
    // Predicated region
    $region18: #{tpu_custom_call.1} parent=1 // pred_check
      _
    $region19: #{tpu_custom_call.1} parent=1 // pred_check_branch
      %21 = sbr.rel (0) target = $region21
    $region20: #{tpu_custom_call.1} parent=1 // pred_region
      _
    $region21: #{tpu_custom_call.1} parent=1 // pred_fallthru
      _
    // Predicated region
    $region22: #{tpu_custom_call.1} parent=1 // pred_check
      _
    $region23: #{tpu_custom_call.1} parent=1 // pred_check_branch
      %23 = sbr.rel (0) target = $region25
    $region24: #{tpu_custom_call.1} parent=1 // pred_region
      _
    $region25: #{tpu_custom_call.1} parent=1 // pred_fallthru
      _
    %v24 = vld [vmem:[%s0] sm:$0x3]
    %v25 = vld [vmem:[%s1] sm:$0xff]
    %v26 = vld [vmem:[%s1 + $0x8] sm:$0xff]
    %v27 = vld [vmem:[%s1 + $0x10] sm:$0xff]
    %v28 = vld [vmem:[%s1 + $0x18] sm:$0xff]
    %v29 = vld [vmem:[%s1 + $0x20] sm:$0xff]
    %v30 = vld [vmem:[%s1 + $0x28] sm:$0xff]
    %v31 = vld [vmem:[%s1 + $0x30] sm:$0xff]
    %v32 = vld [vmem:[%s1 + $0x38] sm:$0xff]
    %34 = vset.pattern.permute.xlu0 0
    %35 = vperm.xlu0 %34, %v25
    %v36 = vpop.permute.xlu0 %35
    %39 = vset.pattern.permute.xlu0 0
    %40 = vperm.xlu0 %39, %v26
    %v41 = vpop.permute.xlu0 %40
    %44 = vset.pattern.permute.xlu0 0
    %45 = vperm.xlu0 %44, %v27
    %v46 = vpop.permute.xlu0 %45
    %49 = vset.pattern.permute.xlu0 0
    %50 = vperm.xlu0 %49, %v28
    %v51 = vpop.permute.xlu0 %50
    %54 = vset.pattern.permute.xlu0 0
    %55 = vperm.xlu0 %54, %v29
    %v56 = vpop.permute.xlu0 %55
    %59 = vset.pattern.permute.xlu0 0
    %60 = vperm.xlu0 %59, %v30
    %v61 = vpop.permute.xlu0 %60
    %64 = vset.pattern.permute.xlu0 0
    %65 = vperm.xlu0 %64, %v31
    %v66 = vpop.permute.xlu0 %65
    %69 = vset.pattern.permute.xlu0 0
    %70 = vperm.xlu0 %69, %v32
    %v71 = vpop.permute.xlu0 %70
    %v74 = vlaneseq
    %v75 = vshrl.u32 %v74, 7
    %v76 = vsub.s32 0, %v75
    %v77 = vrot.slane %v24, %v76
    %v78 = vlaneseq
    %v79 = vshrl.u32 %v78, 7
    %v80 = vsub.s32 1, %v79
    %v81 = vrot.slane %v24, %v80
    %v84 = vmul.f32 %v36, %v77
    %v85 = vmul.f32 %v36, %v81
    %v86 = vmul.f32 %v41, %v77
    %v87 = vmul.f32 %v41, %v81
    %v88 = vmul.f32 %v46, %v77
    %v89 = vmul.f32 %v46, %v81
    %v90 = vmul.f32 %v51, %v77
    %v91 = vmul.f32 %v51, %v81
    %v92 = vmul.f32 %v56, %v77
    %v93 = vmul.f32 %v56, %v81
    %v94 = vmul.f32 %v61, %v77
    %v95 = vmul.f32 %v61, %v81
    %v96 = vmul.f32 %v66, %v77
    %v97 = vmul.f32 %v66, %v81
    %v98 = vmul.f32 %v71, %v77
    %v99 = vmul.f32 %v71, %v81
    %v100 = vld [vmem:[%s3] sm:$0xff]
    %v101 = vld [vmem:[%s3 + $0x8] sm:$0xff]
    %v102 = vld [vmem:[%s3 + $0x10] sm:$0xff]
    %v103 = vld [vmem:[%s3 + $0x18] sm:$0xff]
    %v104 = vld [vmem:[%s3 + $0x20] sm:$0xff]
    %v105 = vld [vmem:[%s3 + $0x28] sm:$0xff]
    %v106 = vld [vmem:[%s3 + $0x30] sm:$0xff]
    %v107 = vld [vmem:[%s3 + $0x38] sm:$0xff]
    %109 = vset.pattern.permute.xlu0 0
    %110 = vperm.xlu0 %109, %v100
    %v111 = vpop.permute.xlu0 %110
    %114 = vset.pattern.permute.xlu0 0
    %115 = vperm.xlu0 %114, %v101
    %v116 = vpop.permute.xlu0 %115
    %119 = vset.pattern.permute.xlu0 0
    %120 = vperm.xlu0 %119, %v102
    %v121 = vpop.permute.xlu0 %120
    %124 = vset.pattern.permute.xlu0 0
    %125 = vperm.xlu0 %124, %v103
    %v126 = vpop.permute.xlu0 %125
    %129 = vset.pattern.permute.xlu0 0
    %130 = vperm.xlu0 %129, %v104
    %v131 = vpop.permute.xlu0 %130
    %134 = vset.pattern.permute.xlu0 0
    %135 = vperm.xlu0 %134, %v105
    %v136 = vpop.permute.xlu0 %135
    %139 = vset.pattern.permute.xlu0 0
    %140 = vperm.xlu0 %139, %v106
    %v141 = vpop.permute.xlu0 %140
    %144 = vset.pattern.permute.xlu0 0
    %145 = vperm.xlu0 %144, %v107
    %v146 = vpop.permute.xlu0 %145
    %v148 = vadd.f32 %v84, %v111
    %v149 = vadd.f32 %v85, %v111
    %v150 = vadd.f32 %v86, %v116
    %v151 = vadd.f32 %v87, %v116
    %v152 = vadd.f32 %v88, %v121
    %v153 = vadd.f32 %v89, %v121
    %v154 = vadd.f32 %v90, %v126
    %v155 = vadd.f32 %v91, %v126
    %v156 = vadd.f32 %v92, %v131
    %v157 = vadd.f32 %v93, %v131
    %v158 = vadd.f32 %v94, %v136
    %v159 = vadd.f32 %v95, %v136
    %v160 = vadd.f32 %v96, %v141
    %v161 = vadd.f32 %v97, %v141
    %v162 = vadd.f32 %v98, %v146
    %v163 = vadd.f32 %v99, %v146
    %v164 = vmax.f32 %v148, 0.0
    %v165 = vmax.f32 %v149, 0.0
    %v166 = vmax.f32 %v150, 0.0
    %v167 = vmax.f32 %v151, 0.0
    %v168 = vmax.f32 %v152, 0.0
    %v169 = vmax.f32 %v153, 0.0
    %v170 = vmax.f32 %v154, 0.0
    %v171 = vmax.f32 %v155, 0.0
    %v172 = vmax.f32 %v156, 0.0
    %v173 = vmax.f32 %v157, 0.0
    %v174 = vmax.f32 %v158, 0.0
    %v175 = vmax.f32 %v159, 0.0
    %v176 = vmax.f32 %v160, 0.0
    %v177 = vmax.f32 %v161, 0.0
    %v178 = vmax.f32 %v162, 0.0
    %v179 = vmax.f32 %v163, 0.0
    %v180 = vld [vmem:[%s2] sm:$0xff]
    %v181 = vld [vmem:[%s2 + $0x8] sm:$0xff]
    %v182 = vld [vmem:[%s2 + $0x10] sm:$0xff]
    %v183 = vld [vmem:[%s2 + $0x18] sm:$0xff]
    %v184 = vld [vmem:[%s2 + $0x20] sm:$0xff]
    %v185 = vld [vmem:[%s2 + $0x28] sm:$0xff]
    %v186 = vld [vmem:[%s2 + $0x30] sm:$0xff]
    %v187 = vld [vmem:[%s2 + $0x38] sm:$0xff]
    %s188 = scalar_lea.vmem %s3, 64
    %v189 = vld [vmem:[%s188] sm:$0xff]
    %v190 = vld [vmem:[%s188 + $0x8] sm:$0xff]
    %v191 = vld [vmem:[%s188 + $0x10] sm:$0xff]
    %v192 = vld [vmem:[%s188 + $0x18] sm:$0xff]
    %v193 = vld [vmem:[%s188 + $0x20] sm:$0xff]
    %v194 = vld [vmem:[%s188 + $0x28] sm:$0xff]
    %v195 = vld [vmem:[%s188 + $0x30] sm:$0xff]
    %v196 = vld [vmem:[%s188 + $0x38] sm:$0xff]
    %198 = vset.pattern.permute.xlu0 0
    %199 = vperm.xlu0 %198, %v189
    %v200 = vpop.permute.xlu0 %199
    %203 = vset.pattern.permute.xlu0 0
    %204 = vperm.xlu0 %203, %v190
    %v205 = vpop.permute.xlu0 %204
    %208 = vset.pattern.permute.xlu0 0
    %209 = vperm.xlu0 %208, %v191
    %v210 = vpop.permute.xlu0 %209
    %213 = vset.pattern.permute.xlu0 0
    %214 = vperm.xlu0 %213, %v192
    %v215 = vpop.permute.xlu0 %214
    %218 = vset.pattern.permute.xlu0 0
    %219 = vperm.xlu0 %218, %v193
    %v220 = vpop.permute.xlu0 %219
    %223 = vset.pattern.permute.xlu0 0
    %224 = vperm.xlu0 %223, %v194
    %v225 = vpop.permute.xlu0 %224
    %228 = vset.pattern.permute.xlu0 0
    %229 = vperm.xlu0 %228, %v195
    %v230 = vpop.permute.xlu0 %229
    %233 = vset.pattern.permute.xlu0 0
    %234 = vperm.xlu0 %233, %v196
    %v235 = vpop.permute.xlu0 %234
    %vm237 = vcmask 523264
    %v239 = vsel %vm237, %v180, 0
    %v242 = vsel %vm237, %v181, 0
    %v245 = vsel %vm237, %v182, 0
    %v248 = vsel %vm237, %v183, 0
    %v251 = vsel %vm237, %v184, 0
    %v254 = vsel %vm237, %v185, 0
    %v257 = vsel %vm237, %v186, 0
    %v260 = vsel %vm237, %v187, 0
    %262 = vmatprep.subr.mxu0 0.0
    %263 = vmatpush1.msra.mxu0 0.0
    %264 = vmatprep.subr.mxu0 0.0
    %265 = vmatpush1.msra.mxu0 0.0
    %266 = vmatprep.subr.mxu0 0.0
    %267 = vmatpush1.msra.mxu0 0.0
    %268 = vmatprep.subr.mxu0 0.0
    %269 = vmatpush1.msra.mxu0 0.0
    %270 = vmatprep.subr.mxu0 0.0
    %271 = vmatpush1.msra.mxu0 0.0
    %272 = vmatprep.subr.mxu0 0.0
    %273 = vmatpush1.msra.mxu0 0.0
    %274 = vmatprep.subr.mxu0 0.0
    %275 = vmatpush1.msra.mxu0 0.0
    %276 = vmatprep.subr.mxu0 0.0
    %277 = vmatpush1.msra.mxu0 0.0
    %278 = vmatprep.subr.mxu0 %v179
    %279 = vmatpush1.msra.mxu0 %v178
    %280 = vmatprep.subr.mxu0 %v177
    %281 = vmatpush1.msra.mxu0 %v176
    %282 = vmatprep.subr.mxu0 %v175
    %283 = vmatpush1.msra.mxu0 %v174
    %284 = vmatprep.subr.mxu0 %v173
    %285 = vmatpush1.msra.mxu0 %v172
    %286 = vmatprep.subr.mxu0 %v171
    %287 = vmatpush1.msra.mxu0 %v170
    %288 = vmatprep.subr.mxu0 %v169
    %289 = vmatpush1.msra.mxu0 %v168
    %290 = vmatprep.subr.mxu0 %v167
    %291 = vmatpush1.msra.mxu0 %v166
    %292 = vmatprep.subr.mxu0 %v165
    %293 = vmatpush1.msra.mxu0 %v164
    %294 = vmatprep.subr.mxu0 0.0
    %295 = vmatpush2.msra.mxu0 0.0
    %296 = vmatprep.subr.mxu0 0.0
    %297 = vmatpush2.msra.mxu0 0.0
    %298 = vmatprep.subr.mxu0 0.0
    %299 = vmatpush2.msra.mxu0 0.0
    %300 = vmatprep.subr.mxu0 0.0
    %301 = vmatpush2.msra.mxu0 0.0
    %302 = vmatprep.subr.mxu0 0.0
    %303 = vmatpush2.msra.mxu0 0.0
    %304 = vmatprep.subr.mxu0 0.0
    %305 = vmatpush2.msra.mxu0 0.0
    %306 = vmatprep.subr.mxu0 0.0
    %307 = vmatpush2.msra.mxu0 0.0
    %308 = vmatprep.subr.mxu0 0.0
    %309 = vmatpush2.msra.mxu0 0.0
    %310 = vmatprep.subr.mxu0 0.0
    %311 = vmatpush2.msra.mxu0 0.0
    %312 = vmatprep.subr.mxu0 0.0
    %313 = vmatpush2.msra.mxu0 0.0
    %314 = vmatprep.subr.mxu0 0.0
    %315 = vmatpush2.msra.mxu0 0.0
    %316 = vmatprep.subr.mxu0 0.0
    %317 = vmatpush2.msra.mxu0 0.0
    %318 = vmatprep.subr.mxu0 0.0
    %319 = vmatpush2.msra.mxu0 0.0
    %320 = vmatprep.subr.mxu0 0.0
    %321 = vmatpush2.msra.mxu0 0.0
    %322 = vmatprep.subr.mxu0 0.0
    %323 = vmatpush2.msra.mxu0 0.0
    %324 = vmatprep.subr.mxu0 0.0
    %325 = vmatpush2.msra.mxu0 0.0
    %326 = vmatprep.mubr.f32.mxu0 0.0
    %327 = vmatmul.mubr.f32.gmra.mxu0 %v239
    %v328 = vpop.f32.mrf.mxu0
    %v329 = vadd.f32 %v200, %v328
    %v330 = vpop.f32.mrf.mxu0
    %v331 = vadd.f32 %v200, %v330
    %332 = vmatprep.mubr.f32.mxu0 0.0
    %333 = vmatmul.mubr.f32.gmra.mxu0 %v242
    %v334 = vpop.f32.mrf.mxu0
    %v335 = vadd.f32 %v205, %v334
    %v336 = vpop.f32.mrf.mxu0
    %v337 = vadd.f32 %v205, %v336
    %338 = vmatprep.mubr.f32.mxu0 0.0
    %339 = vmatmul.mubr.f32.gmra.mxu0 %v245
    %v340 = vpop.f32.mrf.mxu0
    %v341 = vadd.f32 %v210, %v340
    %v342 = vpop.f32.mrf.mxu0
    %v343 = vadd.f32 %v210, %v342
    %344 = vmatprep.mubr.f32.mxu0 0.0
    %345 = vmatmul.mubr.f32.gmra.mxu0 %v248
    %v346 = vpop.f32.mrf.mxu0
    %v347 = vadd.f32 %v215, %v346
    %v348 = vpop.f32.mrf.mxu0
    %v349 = vadd.f32 %v215, %v348
    %350 = vmatprep.mubr.f32.mxu0 0.0
    %351 = vmatmul.mubr.f32.gmra.mxu0 %v251
    %v352 = vpop.f32.mrf.mxu0
    %v353 = vadd.f32 %v220, %v352
    %v354 = vpop.f32.mrf.mxu0
    %v355 = vadd.f32 %v220, %v354
    %356 = vmatprep.mubr.f32.mxu0 0.0
    %357 = vmatmul.mubr.f32.gmra.mxu0 %v254
    %v358 = vpop.f32.mrf.mxu0
    %v359 = vadd.f32 %v225, %v358
    %v360 = vpop.f32.mrf.mxu0
    %v361 = vadd.f32 %v225, %v360
    %362 = vmatprep.mubr.f32.mxu0 0.0
    %363 = vmatmul.mubr.f32.gmra.mxu0 %v257
    %v364 = vpop.f32.mrf.mxu0
    %v365 = vadd.f32 %v230, %v364
    %v366 = vpop.f32.mrf.mxu0
    %v367 = vadd.f32 %v230, %v366
    %368 = vmatprep.mubr.f32.mxu0 0.0
    %369 = vmatmul.mubr.f32.gmra.mxu0 %v260
    %v370 = vpop.f32.mrf.mxu0
    %v371 = vadd.f32 %v235, %v370
    %v372 = vpop.f32.mrf.mxu0
    %v373 = vadd.f32 %v235, %v372
    %374 = vdwg.mxu0
    %v375 = vmax.f32 %v329, 0.0
    %v376 = vmax.f32 %v331, 0.0
    %v377 = vmax.f32 %v335, 0.0
    %v378 = vmax.f32 %v337, 0.0
    %v379 = vmax.f32 %v341, 0.0
    %v380 = vmax.f32 %v343, 0.0
    %v381 = vmax.f32 %v347, 0.0
    %v382 = vmax.f32 %v349, 0.0
    %v383 = vmax.f32 %v353, 0.0
    %v384 = vmax.f32 %v355, 0.0
    %v385 = vmax.f32 %v359, 0.0
    %v386 = vmax.f32 %v361, 0.0
    %v387 = vmax.f32 %v365, 0.0
    %v388 = vmax.f32 %v367, 0.0
    %v389 = vmax.f32 %v371, 0.0
    %v390 = vmax.f32 %v373, 0.0
    %s391 = scalar_lea.vmem %s2, 64
    %v392 = vld [vmem:[%s391] sm:$0xff]
    %v393 = vld [vmem:[%s391 + $0x8] sm:$0xff]
    %v394 = vld [vmem:[%s391 + $0x10] sm:$0xff]
    %v395 = vld [vmem:[%s391 + $0x18] sm:$0xff]
    %v396 = vld [vmem:[%s391 + $0x20] sm:$0xff]
    %v397 = vld [vmem:[%s391 + $0x28] sm:$0xff]
    %v398 = vld [vmem:[%s391 + $0x30] sm:$0xff]
    %v399 = vld [vmem:[%s391 + $0x38] sm:$0xff]
    %s400 = scalar_lea.vmem %s3, 128
    %v401 = vld [vmem:[%s400] sm:$0xff]
    %v402 = vld [vmem:[%s400 + $0x8] sm:$0xff]
    %v403 = vld [vmem:[%s400 + $0x10] sm:$0xff]
    %v404 = vld [vmem:[%s400 + $0x18] sm:$0xff]
    %v405 = vld [vmem:[%s400 + $0x20] sm:$0xff]
    %v406 = vld [vmem:[%s400 + $0x28] sm:$0xff]
    %v407 = vld [vmem:[%s400 + $0x30] sm:$0xff]
    %v408 = vld [vmem:[%s400 + $0x38] sm:$0xff]
    %410 = vset.pattern.permute.xlu0 0
    %411 = vperm.xlu0 %410, %v401
    %v412 = vpop.permute.xlu0 %411
    %415 = vset.pattern.permute.xlu0 0
    %416 = vperm.xlu0 %415, %v402
    %v417 = vpop.permute.xlu0 %416
    %420 = vset.pattern.permute.xlu0 0
    %421 = vperm.xlu0 %420, %v403
    %v422 = vpop.permute.xlu0 %421
    %425 = vset.pattern.permute.xlu0 0
    %426 = vperm.xlu0 %425, %v404
    %v427 = vpop.permute.xlu0 %426
    %430 = vset.pattern.permute.xlu0 0
    %431 = vperm.xlu0 %430, %v405
    %v432 = vpop.permute.xlu0 %431
    %435 = vset.pattern.permute.xlu0 0
    %436 = vperm.xlu0 %435, %v406
    %v437 = vpop.permute.xlu0 %436
    %440 = vset.pattern.permute.xlu0 0
    %441 = vperm.xlu0 %440, %v407
    %v442 = vpop.permute.xlu0 %441
    %445 = vset.pattern.permute.xlu0 0
    %446 = vperm.xlu0 %445, %v408
    %v447 = vpop.permute.xlu0 %446
    %v450 = vsel %vm237, %v392, 0
    %v453 = vsel %vm237, %v393, 0
    %v456 = vsel %vm237, %v394, 0
    %v459 = vsel %vm237, %v395, 0
    %v462 = vsel %vm237, %v396, 0
    %v465 = vsel %vm237, %v397, 0
    %v468 = vsel %vm237, %v398, 0
    %v471 = vsel %vm237, %v399, 0
    %473 = vmatprep.subr.mxu0 0.0
    %474 = vmatpush1.msra.mxu0 0.0
    %475 = vmatprep.subr.mxu0 0.0
    %476 = vmatpush1.msra.mxu0 0.0
    %477 = vmatprep.subr.mxu0 0.0
    %478 = vmatpush1.msra.mxu0 0.0
    %479 = vmatprep.subr.mxu0 0.0
    %480 = vmatpush1.msra.mxu0 0.0
    %481 = vmatprep.subr.mxu0 0.0
    %482 = vmatpush1.msra.mxu0 0.0
    %483 = vmatprep.subr.mxu0 0.0
    %484 = vmatpush1.msra.mxu0 0.0
    %485 = vmatprep.subr.mxu0 0.0
    %486 = vmatpush1.msra.mxu0 0.0
    %487 = vmatprep.subr.mxu0 0.0
    %488 = vmatpush1.msra.mxu0 0.0
    %489 = vmatprep.subr.mxu0 %v390
    %490 = vmatpush1.msra.mxu0 %v389
    %491 = vmatprep.subr.mxu0 %v388
    %492 = vmatpush1.msra.mxu0 %v387
    %493 = vmatprep.subr.mxu0 %v386
    %494 = vmatpush1.msra.mxu0 %v385
    %495 = vmatprep.subr.mxu0 %v384
    %496 = vmatpush1.msra.mxu0 %v383
    %497 = vmatprep.subr.mxu0 %v382
    %498 = vmatpush1.msra.mxu0 %v381
    %499 = vmatprep.subr.mxu0 %v380
    %500 = vmatpush1.msra.mxu0 %v379
    %501 = vmatprep.subr.mxu0 %v378
    %502 = vmatpush1.msra.mxu0 %v377
    %503 = vmatprep.subr.mxu0 %v376
    %504 = vmatpush1.msra.mxu0 %v375
    %505 = vmatprep.subr.mxu0 0.0
    %506 = vmatpush2.msra.mxu0 0.0
    %507 = vmatprep.subr.mxu0 0.0
    %508 = vmatpush2.msra.mxu0 0.0
    %509 = vmatprep.subr.mxu0 0.0
    %510 = vmatpush2.msra.mxu0 0.0
    %511 = vmatprep.subr.mxu0 0.0
    %512 = vmatpush2.msra.mxu0 0.0
    %513 = vmatprep.subr.mxu0 0.0
    %514 = vmatpush2.msra.mxu0 0.0
    %515 = vmatprep.subr.mxu0 0.0
    %516 = vmatpush2.msra.mxu0 0.0
    %517 = vmatprep.subr.mxu0 0.0
    %518 = vmatpush2.msra.mxu0 0.0
    %519 = vmatprep.subr.mxu0 0.0
    %520 = vmatpush2.msra.mxu0 0.0
    %521 = vmatprep.subr.mxu0 0.0
    %522 = vmatpush2.msra.mxu0 0.0
    %523 = vmatprep.subr.mxu0 0.0
    %524 = vmatpush2.msra.mxu0 0.0
    %525 = vmatprep.subr.mxu0 0.0
    %526 = vmatpush2.msra.mxu0 0.0
    %527 = vmatprep.subr.mxu0 0.0
    %528 = vmatpush2.msra.mxu0 0.0
    %529 = vmatprep.subr.mxu0 0.0
    %530 = vmatpush2.msra.mxu0 0.0
    %531 = vmatprep.subr.mxu0 0.0
    %532 = vmatpush2.msra.mxu0 0.0
    %533 = vmatprep.subr.mxu0 0.0
    %534 = vmatpush2.msra.mxu0 0.0
    %535 = vmatprep.subr.mxu0 0.0
    %536 = vmatpush2.msra.mxu0 0.0
    %537 = vmatprep.mubr.f32.mxu0 0.0
    %538 = vmatmul.mubr.f32.gmra.mxu0 %v450
    %v539 = vpop.f32.mrf.mxu0
    %v540 = vadd.f32 %v412, %v539
    %v541 = vpop.f32.mrf.mxu0
    %v542 = vadd.f32 %v412, %v541
    %543 = vmatprep.mubr.f32.mxu0 0.0
    %544 = vmatmul.mubr.f32.gmra.mxu0 %v453
    %v545 = vpop.f32.mrf.mxu0
    %v546 = vadd.f32 %v417, %v545
    %v547 = vpop.f32.mrf.mxu0
    %v548 = vadd.f32 %v417, %v547
    %549 = vmatprep.mubr.f32.mxu0 0.0
    %550 = vmatmul.mubr.f32.gmra.mxu0 %v456
    %v551 = vpop.f32.mrf.mxu0
    %v552 = vadd.f32 %v422, %v551
    %v553 = vpop.f32.mrf.mxu0
    %v554 = vadd.f32 %v422, %v553
    %555 = vmatprep.mubr.f32.mxu0 0.0
    %556 = vmatmul.mubr.f32.gmra.mxu0 %v459
    %v557 = vpop.f32.mrf.mxu0
    %v558 = vadd.f32 %v427, %v557
    %v559 = vpop.f32.mrf.mxu0
    %v560 = vadd.f32 %v427, %v559
    %561 = vmatprep.mubr.f32.mxu0 0.0
    %562 = vmatmul.mubr.f32.gmra.mxu0 %v462
    %v563 = vpop.f32.mrf.mxu0
    %v564 = vadd.f32 %v432, %v563
    %v565 = vpop.f32.mrf.mxu0
    %v566 = vadd.f32 %v432, %v565
    %567 = vmatprep.mubr.f32.mxu0 0.0
    %568 = vmatmul.mubr.f32.gmra.mxu0 %v465
    %v569 = vpop.f32.mrf.mxu0
    %v570 = vadd.f32 %v437, %v569
    %v571 = vpop.f32.mrf.mxu0
    %v572 = vadd.f32 %v437, %v571
    %573 = vmatprep.mubr.f32.mxu0 0.0
    %574 = vmatmul.mubr.f32.gmra.mxu0 %v468
    %v575 = vpop.f32.mrf.mxu0
    %v576 = vadd.f32 %v442, %v575
    %v577 = vpop.f32.mrf.mxu0
    %v578 = vadd.f32 %v442, %v577
    %579 = vmatprep.mubr.f32.mxu0 0.0
    %580 = vmatmul.mubr.f32.gmra.mxu0 %v471
    %v581 = vpop.f32.mrf.mxu0
    %v582 = vadd.f32 %v447, %v581
    %v583 = vpop.f32.mrf.mxu0
    %v584 = vadd.f32 %v447, %v583
    %585 = vdwg.mxu0
    %v586 = vmax.f32 %v540, 0.0
    %v587 = vmax.f32 %v542, 0.0
    %v588 = vmax.f32 %v546, 0.0
    %v589 = vmax.f32 %v548, 0.0
    %v590 = vmax.f32 %v552, 0.0
    %v591 = vmax.f32 %v554, 0.0
    %v592 = vmax.f32 %v558, 0.0
    %v593 = vmax.f32 %v560, 0.0
    %v594 = vmax.f32 %v564, 0.0
    %v595 = vmax.f32 %v566, 0.0
    %v596 = vmax.f32 %v570, 0.0
    %v597 = vmax.f32 %v572, 0.0
    %v598 = vmax.f32 %v576, 0.0
    %v599 = vmax.f32 %v578, 0.0
    %v600 = vmax.f32 %v582, 0.0
    %v601 = vmax.f32 %v584, 0.0
    %s602 = scalar_lea.vmem %s2, 128
    %v603 = vld [vmem:[%s602] sm:$0xff]
    %v604 = vld [vmem:[%s602 + $0x8] sm:$0xff]
    %v605 = vld [vmem:[%s602 + $0x10] sm:$0xff]
    %v606 = vld [vmem:[%s602 + $0x18] sm:$0xff]
    %v607 = vld [vmem:[%s602 + $0x20] sm:$0xff]
    %v608 = vld [vmem:[%s602 + $0x28] sm:$0xff]
    %v609 = vld [vmem:[%s602 + $0x30] sm:$0xff]
    %v610 = vld [vmem:[%s602 + $0x38] sm:$0xff]
    %s611 = scalar_lea.vmem %s3, 192
    %v612 = vld [vmem:[%s611] sm:$0xff]
    %v613 = vld [vmem:[%s611 + $0x8] sm:$0xff]
    %v614 = vld [vmem:[%s611 + $0x10] sm:$0xff]
    %v615 = vld [vmem:[%s611 + $0x18] sm:$0xff]
    %v616 = vld [vmem:[%s611 + $0x20] sm:$0xff]
    %v617 = vld [vmem:[%s611 + $0x28] sm:$0xff]
    %v618 = vld [vmem:[%s611 + $0x30] sm:$0xff]
    %v619 = vld [vmem:[%s611 + $0x38] sm:$0xff]
    %621 = vset.pattern.permute.xlu0 0
    %622 = vperm.xlu0 %621, %v612
    %v623 = vpop.permute.xlu0 %622
    %626 = vset.pattern.permute.xlu0 0
    %627 = vperm.xlu0 %626, %v613
    %v628 = vpop.permute.xlu0 %627
    %631 = vset.pattern.permute.xlu0 0
    %632 = vperm.xlu0 %631, %v614
    %v633 = vpop.permute.xlu0 %632
    %636 = vset.pattern.permute.xlu0 0
    %637 = vperm.xlu0 %636, %v615
    %v638 = vpop.permute.xlu0 %637
    %641 = vset.pattern.permute.xlu0 0
    %642 = vperm.xlu0 %641, %v616
    %v643 = vpop.permute.xlu0 %642
    %646 = vset.pattern.permute.xlu0 0
    %647 = vperm.xlu0 %646, %v617
    %v648 = vpop.permute.xlu0 %647
    %651 = vset.pattern.permute.xlu0 0
    %652 = vperm.xlu0 %651, %v618
    %v653 = vpop.permute.xlu0 %652
    %656 = vset.pattern.permute.xlu0 0
    %657 = vperm.xlu0 %656, %v619
    %v658 = vpop.permute.xlu0 %657
    %v661 = vsel %vm237, %v603, 0
    %v664 = vsel %vm237, %v604, 0
    %v667 = vsel %vm237, %v605, 0
    %v670 = vsel %vm237, %v606, 0
    %v673 = vsel %vm237, %v607, 0
    %v676 = vsel %vm237, %v608, 0
    %v679 = vsel %vm237, %v609, 0
    %v682 = vsel %vm237, %v610, 0
    %684 = vmatprep.subr.mxu0 0.0
    %685 = vmatpush1.msra.mxu0 0.0
    %686 = vmatprep.subr.mxu0 0.0
    %687 = vmatpush1.msra.mxu0 0.0
    %688 = vmatprep.subr.mxu0 0.0
    %689 = vmatpush1.msra.mxu0 0.0
    %690 = vmatprep.subr.mxu0 0.0
    %691 = vmatpush1.msra.mxu0 0.0
    %692 = vmatprep.subr.mxu0 0.0
    %693 = vmatpush1.msra.mxu0 0.0
    %694 = vmatprep.subr.mxu0 0.0
    %695 = vmatpush1.msra.mxu0 0.0
    %696 = vmatprep.subr.mxu0 0.0
    %697 = vmatpush1.msra.mxu0 0.0
    %698 = vmatprep.subr.mxu0 0.0
    %699 = vmatpush1.msra.mxu0 0.0
    %700 = vmatprep.subr.mxu0 %v601
    %701 = vmatpush1.msra.mxu0 %v600
    %702 = vmatprep.subr.mxu0 %v599
    %703 = vmatpush1.msra.mxu0 %v598
    %704 = vmatprep.subr.mxu0 %v597
    %705 = vmatpush1.msra.mxu0 %v596
    %706 = vmatprep.subr.mxu0 %v595
    %707 = vmatpush1.msra.mxu0 %v594
    %708 = vmatprep.subr.mxu0 %v593
    %709 = vmatpush1.msra.mxu0 %v592
    %710 = vmatprep.subr.mxu0 %v591
    %711 = vmatpush1.msra.mxu0 %v590
    %712 = vmatprep.subr.mxu0 %v589
    %713 = vmatpush1.msra.mxu0 %v588
    %714 = vmatprep.subr.mxu0 %v587
    %715 = vmatpush1.msra.mxu0 %v586
    %716 = vmatprep.subr.mxu0 0.0
    %717 = vmatpush2.msra.mxu0 0.0
    %718 = vmatprep.subr.mxu0 0.0
    %719 = vmatpush2.msra.mxu0 0.0
    %720 = vmatprep.subr.mxu0 0.0
    %721 = vmatpush2.msra.mxu0 0.0
    %722 = vmatprep.subr.mxu0 0.0
    %723 = vmatpush2.msra.mxu0 0.0
    %724 = vmatprep.subr.mxu0 0.0
    %725 = vmatpush2.msra.mxu0 0.0
    %726 = vmatprep.subr.mxu0 0.0
    %727 = vmatpush2.msra.mxu0 0.0
    %728 = vmatprep.subr.mxu0 0.0
    %729 = vmatpush2.msra.mxu0 0.0
    %730 = vmatprep.subr.mxu0 0.0
    %731 = vmatpush2.msra.mxu0 0.0
    %732 = vmatprep.subr.mxu0 0.0
    %733 = vmatpush2.msra.mxu0 0.0
    %734 = vmatprep.subr.mxu0 0.0
    %735 = vmatpush2.msra.mxu0 0.0
    %736 = vmatprep.subr.mxu0 0.0
    %737 = vmatpush2.msra.mxu0 0.0
    %738 = vmatprep.subr.mxu0 0.0
    %739 = vmatpush2.msra.mxu0 0.0
    %740 = vmatprep.subr.mxu0 0.0
    %741 = vmatpush2.msra.mxu0 0.0
    %742 = vmatprep.subr.mxu0 0.0
    %743 = vmatpush2.msra.mxu0 0.0
    %744 = vmatprep.subr.mxu0 0.0
    %745 = vmatpush2.msra.mxu0 0.0
    %746 = vmatprep.subr.mxu0 0.0
    %747 = vmatpush2.msra.mxu0 0.0
    %748 = vmatprep.mubr.f32.mxu0 0.0
    %749 = vmatmul.mubr.f32.gmra.mxu0 %v661
    %v750 = vpop.f32.mrf.mxu0
    %v751 = vadd.f32 %v623, %v750
    %v752 = vpop.f32.mrf.mxu0
    %v753 = vadd.f32 %v623, %v752
    %754 = vmatprep.mubr.f32.mxu0 0.0
    %755 = vmatmul.mubr.f32.gmra.mxu0 %v664
    %v756 = vpop.f32.mrf.mxu0
    %v757 = vadd.f32 %v628, %v756
    %v758 = vpop.f32.mrf.mxu0
    %v759 = vadd.f32 %v628, %v758
    %760 = vmatprep.mubr.f32.mxu0 0.0
    %761 = vmatmul.mubr.f32.gmra.mxu0 %v667
    %v762 = vpop.f32.mrf.mxu0
    %v763 = vadd.f32 %v633, %v762
    %v764 = vpop.f32.mrf.mxu0
    %v765 = vadd.f32 %v633, %v764
    %766 = vmatprep.mubr.f32.mxu0 0.0
    %767 = vmatmul.mubr.f32.gmra.mxu0 %v670
    %v768 = vpop.f32.mrf.mxu0
    %v769 = vadd.f32 %v638, %v768
    %v770 = vpop.f32.mrf.mxu0
    %v771 = vadd.f32 %v638, %v770
    %772 = vmatprep.mubr.f32.mxu0 0.0
    %773 = vmatmul.mubr.f32.gmra.mxu0 %v673
    %v774 = vpop.f32.mrf.mxu0
    %v775 = vadd.f32 %v643, %v774
    %v776 = vpop.f32.mrf.mxu0
    %v777 = vadd.f32 %v643, %v776
    %778 = vmatprep.mubr.f32.mxu0 0.0
    %779 = vmatmul.mubr.f32.gmra.mxu0 %v676
    %v780 = vpop.f32.mrf.mxu0
    %v781 = vadd.f32 %v648, %v780
    %v782 = vpop.f32.mrf.mxu0
    %v783 = vadd.f32 %v648, %v782
    %784 = vmatprep.mubr.f32.mxu0 0.0
    %785 = vmatmul.mubr.f32.gmra.mxu0 %v679
    %v786 = vpop.f32.mrf.mxu0
    %v787 = vadd.f32 %v653, %v786
    %v788 = vpop.f32.mrf.mxu0
    %v789 = vadd.f32 %v653, %v788
    %790 = vmatprep.mubr.f32.mxu0 0.0
    %791 = vmatmul.mubr.f32.gmra.mxu0 %v682
    %v792 = vpop.f32.mrf.mxu0
    %v793 = vadd.f32 %v658, %v792
    %v794 = vpop.f32.mrf.mxu0
    %v795 = vadd.f32 %v658, %v794
    %796 = vdwg.mxu0
    %v797 = vmax.f32 %v751, 0.0
    %v798 = vmax.f32 %v753, 0.0
    %v799 = vmax.f32 %v757, 0.0
    %v800 = vmax.f32 %v759, 0.0
    %v801 = vmax.f32 %v763, 0.0
    %v802 = vmax.f32 %v765, 0.0
    %v803 = vmax.f32 %v769, 0.0
    %v804 = vmax.f32 %v771, 0.0
    %v805 = vmax.f32 %v775, 0.0
    %v806 = vmax.f32 %v777, 0.0
    %v807 = vmax.f32 %v781, 0.0
    %v808 = vmax.f32 %v783, 0.0
    %v809 = vmax.f32 %v787, 0.0
    %v810 = vmax.f32 %v789, 0.0
    %v811 = vmax.f32 %v793, 0.0
    %v812 = vmax.f32 %v795, 0.0
    %s813 = scalar_lea.vmem %s2, 192
    %v814 = vld [vmem:[%s813] sm:$0xff]
    %v815 = vld [vmem:[%s813 + $0x8] sm:$0xff]
    %v816 = vld [vmem:[%s813 + $0x10] sm:$0xff]
    %v817 = vld [vmem:[%s813 + $0x18] sm:$0xff]
    %v818 = vld [vmem:[%s813 + $0x20] sm:$0xff]
    %v819 = vld [vmem:[%s813 + $0x28] sm:$0xff]
    %v820 = vld [vmem:[%s813 + $0x30] sm:$0xff]
    %v821 = vld [vmem:[%s813 + $0x38] sm:$0xff]
    %s822 = scalar_lea.vmem %s3, 256
    %v823 = vld [vmem:[%s822] sm:$0xff]
    %v824 = vld [vmem:[%s822 + $0x8] sm:$0xff]
    %v825 = vld [vmem:[%s822 + $0x10] sm:$0xff]
    %v826 = vld [vmem:[%s822 + $0x18] sm:$0xff]
    %v827 = vld [vmem:[%s822 + $0x20] sm:$0xff]
    %v828 = vld [vmem:[%s822 + $0x28] sm:$0xff]
    %v829 = vld [vmem:[%s822 + $0x30] sm:$0xff]
    %v830 = vld [vmem:[%s822 + $0x38] sm:$0xff]
    %832 = vset.pattern.permute.xlu0 0
    %833 = vperm.xlu0 %832, %v823
    %v834 = vpop.permute.xlu0 %833
    %837 = vset.pattern.permute.xlu0 0
    %838 = vperm.xlu0 %837, %v824
    %v839 = vpop.permute.xlu0 %838
    %842 = vset.pattern.permute.xlu0 0
    %843 = vperm.xlu0 %842, %v825
    %v844 = vpop.permute.xlu0 %843
    %847 = vset.pattern.permute.xlu0 0
    %848 = vperm.xlu0 %847, %v826
    %v849 = vpop.permute.xlu0 %848
    %852 = vset.pattern.permute.xlu0 0
    %853 = vperm.xlu0 %852, %v827
    %v854 = vpop.permute.xlu0 %853
    %857 = vset.pattern.permute.xlu0 0
    %858 = vperm.xlu0 %857, %v828
    %v859 = vpop.permute.xlu0 %858
    %862 = vset.pattern.permute.xlu0 0
    %863 = vperm.xlu0 %862, %v829
    %v864 = vpop.permute.xlu0 %863
    %867 = vset.pattern.permute.xlu0 0
    %868 = vperm.xlu0 %867, %v830
    %v869 = vpop.permute.xlu0 %868
    %v872 = vsel %vm237, %v814, 0
    %v875 = vsel %vm237, %v815, 0
    %v878 = vsel %vm237, %v816, 0
    %v881 = vsel %vm237, %v817, 0
    %v884 = vsel %vm237, %v818, 0
    %v887 = vsel %vm237, %v819, 0
    %v890 = vsel %vm237, %v820, 0
    %v893 = vsel %vm237, %v821, 0
    %895 = vmatprep.subr.mxu0 0.0
    %896 = vmatpush1.msra.mxu0 0.0
    %897 = vmatprep.subr.mxu0 0.0
    %898 = vmatpush1.msra.mxu0 0.0
    %899 = vmatprep.subr.mxu0 0.0
    %900 = vmatpush1.msra.mxu0 0.0
    %901 = vmatprep.subr.mxu0 0.0
    %902 = vmatpush1.msra.mxu0 0.0
    %903 = vmatprep.subr.mxu0 0.0
    %904 = vmatpush1.msra.mxu0 0.0
    %905 = vmatprep.subr.mxu0 0.0
    %906 = vmatpush1.msra.mxu0 0.0
    %907 = vmatprep.subr.mxu0 0.0
    %908 = vmatpush1.msra.mxu0 0.0
    %909 = vmatprep.subr.mxu0 0.0
    %910 = vmatpush1.msra.mxu0 0.0
    %911 = vmatprep.subr.mxu0 %v812
    %912 = vmatpush1.msra.mxu0 %v811
    %913 = vmatprep.subr.mxu0 %v810
    %914 = vmatpush1.msra.mxu0 %v809
    %915 = vmatprep.subr.mxu0 %v808
    %916 = vmatpush1.msra.mxu0 %v807
    %917 = vmatprep.subr.mxu0 %v806
    %918 = vmatpush1.msra.mxu0 %v805
    %919 = vmatprep.subr.mxu0 %v804
    %920 = vmatpush1.msra.mxu0 %v803
    %921 = vmatprep.subr.mxu0 %v802
    %922 = vmatpush1.msra.mxu0 %v801
    %923 = vmatprep.subr.mxu0 %v800
    %924 = vmatpush1.msra.mxu0 %v799
    %925 = vmatprep.subr.mxu0 %v798
    %926 = vmatpush1.msra.mxu0 %v797
    %927 = vmatprep.subr.mxu0 0.0
    %928 = vmatpush2.msra.mxu0 0.0
    %929 = vmatprep.subr.mxu0 0.0
    %930 = vmatpush2.msra.mxu0 0.0
    %931 = vmatprep.subr.mxu0 0.0
    %932 = vmatpush2.msra.mxu0 0.0
    %933 = vmatprep.subr.mxu0 0.0
    %934 = vmatpush2.msra.mxu0 0.0
    %935 = vmatprep.subr.mxu0 0.0
    %936 = vmatpush2.msra.mxu0 0.0
    %937 = vmatprep.subr.mxu0 0.0
    %938 = vmatpush2.msra.mxu0 0.0
    %939 = vmatprep.subr.mxu0 0.0
    %940 = vmatpush2.msra.mxu0 0.0
    %941 = vmatprep.subr.mxu0 0.0
    %942 = vmatpush2.msra.mxu0 0.0
    %943 = vmatprep.subr.mxu0 0.0
    %944 = vmatpush2.msra.mxu0 0.0
    %945 = vmatprep.subr.mxu0 0.0
    %946 = vmatpush2.msra.mxu0 0.0
    %947 = vmatprep.subr.mxu0 0.0
    %948 = vmatpush2.msra.mxu0 0.0
    %949 = vmatprep.subr.mxu0 0.0
    %950 = vmatpush2.msra.mxu0 0.0
    %951 = vmatprep.subr.mxu0 0.0
    %952 = vmatpush2.msra.mxu0 0.0
    %953 = vmatprep.subr.mxu0 0.0
    %954 = vmatpush2.msra.mxu0 0.0
    %955 = vmatprep.subr.mxu0 0.0
    %956 = vmatpush2.msra.mxu0 0.0
    %957 = vmatprep.subr.mxu0 0.0
    %958 = vmatpush2.msra.mxu0 0.0
    %959 = vmatprep.mubr.f32.mxu0 0.0
    %960 = vmatmul.mubr.f32.gmra.mxu0 %v872
    %v961 = vpop.f32.mrf.mxu0
    %v962 = vadd.f32 %v834, %v961
    %v963 = vpop.f32.mrf.mxu0
    %v964 = vadd.f32 %v834, %v963
    %965 = vmatprep.mubr.f32.mxu0 0.0
    %966 = vmatmul.mubr.f32.gmra.mxu0 %v875
    %v967 = vpop.f32.mrf.mxu0
    %v968 = vadd.f32 %v839, %v967
    %v969 = vpop.f32.mrf.mxu0
    %v970 = vadd.f32 %v839, %v969
    %971 = vmatprep.mubr.f32.mxu0 0.0
    %972 = vmatmul.mubr.f32.gmra.mxu0 %v878
    %v973 = vpop.f32.mrf.mxu0
    %v974 = vadd.f32 %v844, %v973
    %v975 = vpop.f32.mrf.mxu0
    %v976 = vadd.f32 %v844, %v975
    %977 = vmatprep.mubr.f32.mxu0 0.0
    %978 = vmatmul.mubr.f32.gmra.mxu0 %v881
    %v979 = vpop.f32.mrf.mxu0
    %v980 = vadd.f32 %v849, %v979
    %v981 = vpop.f32.mrf.mxu0
    %v982 = vadd.f32 %v849, %v981
    %983 = vmatprep.mubr.f32.mxu0 0.0
    %984 = vmatmul.mubr.f32.gmra.mxu0 %v884
    %v985 = vpop.f32.mrf.mxu0
    %v986 = vadd.f32 %v854, %v985
    %v987 = vpop.f32.mrf.mxu0
    %v988 = vadd.f32 %v854, %v987
    %989 = vmatprep.mubr.f32.mxu0 0.0
    %990 = vmatmul.mubr.f32.gmra.mxu0 %v887
    %v991 = vpop.f32.mrf.mxu0
    %v992 = vadd.f32 %v859, %v991
    %v993 = vpop.f32.mrf.mxu0
    %v994 = vadd.f32 %v859, %v993
    %995 = vmatprep.mubr.f32.mxu0 0.0
    %996 = vmatmul.mubr.f32.gmra.mxu0 %v890
    %v997 = vpop.f32.mrf.mxu0
    %v998 = vadd.f32 %v864, %v997
    %v999 = vpop.f32.mrf.mxu0
    %v1000 = vadd.f32 %v864, %v999
    %1001 = vmatprep.mubr.f32.mxu0 0.0
    %1002 = vmatmul.mubr.f32.gmra.mxu0 %v893
    %v1003 = vpop.f32.mrf.mxu0
    %v1004 = vadd.f32 %v869, %v1003
    %v1005 = vpop.f32.mrf.mxu0
    %v1006 = vadd.f32 %v869, %v1005
    %1007 = vdwg.mxu0
    %v1008 = vmax.f32 %v962, 0.0
    %v1009 = vmax.f32 %v964, 0.0
    %v1010 = vmax.f32 %v968, 0.0
    %v1011 = vmax.f32 %v970, 0.0
    %v1012 = vmax.f32 %v974, 0.0
    %v1013 = vmax.f32 %v976, 0.0
    %v1014 = vmax.f32 %v980, 0.0
    %v1015 = vmax.f32 %v982, 0.0
    %v1016 = vmax.f32 %v986, 0.0
    %v1017 = vmax.f32 %v988, 0.0
    %v1018 = vmax.f32 %v992, 0.0
    %v1019 = vmax.f32 %v994, 0.0
    %v1020 = vmax.f32 %v998, 0.0
    %v1021 = vmax.f32 %v1000, 0.0
    %v1022 = vmax.f32 %v1004, 0.0
    %v1023 = vmax.f32 %v1006, 0.0
    %v1024 = vld [vmem:[%s4] sm:$0xff]
    %v1025 = vld [vmem:[%s4 + $0x8] sm:$0xff]
    %v1026 = vld [vmem:[%s4 + $0x10] sm:$0xff]
    %v1027 = vld [vmem:[%s4 + $0x18] sm:$0xff]
    %v1028 = vld [vmem:[%s4 + $0x20] sm:$0xff]
    %v1029 = vld [vmem:[%s4 + $0x28] sm:$0xff]
    %v1030 = vld [vmem:[%s4 + $0x30] sm:$0xff]
    %v1031 = vld [vmem:[%s4 + $0x38] sm:$0xff]
    %v1032 = vld [vmem:[%s5] sm:$0x1]
    %1034 = vset.pattern.permute.xlu0 0
    %1035 = vperm.xlu0 %1034, %v1024
    %v1036 = vpop.permute.xlu0 %1035
    %1039 = vset.pattern.permute.xlu0 0
    %1040 = vperm.xlu0 %1039, %v1025
    %v1041 = vpop.permute.xlu0 %1040
    %1044 = vset.pattern.permute.xlu0 0
    %1045 = vperm.xlu0 %1044, %v1026
    %v1046 = vpop.permute.xlu0 %1045
    %1049 = vset.pattern.permute.xlu0 0
    %1050 = vperm.xlu0 %1049, %v1027
    %v1051 = vpop.permute.xlu0 %1050
    %1054 = vset.pattern.permute.xlu0 0
    %1055 = vperm.xlu0 %1054, %v1028
    %v1056 = vpop.permute.xlu0 %1055
    %1059 = vset.pattern.permute.xlu0 0
    %1060 = vperm.xlu0 %1059, %v1029
    %v1061 = vpop.permute.xlu0 %1060
    %1064 = vset.pattern.permute.xlu0 0
    %1065 = vperm.xlu0 %1064, %v1030
    %v1066 = vpop.permute.xlu0 %1065
    %1069 = vset.pattern.permute.xlu0 0
    %1070 = vperm.xlu0 %1069, %v1031
    %v1071 = vpop.permute.xlu0 %1070
    %v1073 = vmul.f32 %v1008, %v1036
    %v1074 = vmul.f32 %v1009, %v1036
    %v1075 = vmul.f32 %v1010, %v1041
    %v1076 = vmul.f32 %v1011, %v1041
    %v1077 = vmul.f32 %v1012, %v1046
    %v1078 = vmul.f32 %v1013, %v1046
    %v1079 = vmul.f32 %v1014, %v1051
    %v1080 = vmul.f32 %v1015, %v1051
    %v1081 = vmul.f32 %v1016, %v1056
    %v1082 = vmul.f32 %v1017, %v1056
    %v1083 = vmul.f32 %v1018, %v1061
    %v1084 = vmul.f32 %v1019, %v1061
    %v1085 = vmul.f32 %v1020, %v1066
    %v1086 = vmul.f32 %v1021, %v1066
    %v1087 = vmul.f32 %v1022, %v1071
    %v1088 = vmul.f32 %v1023, %v1071
    %v1089 = vadd.f32 %v1073, %v1075
    %v1090 = vadd.f32 %v1089, %v1077
    %v1091 = vadd.f32 %v1090, %v1079
    %v1092 = vadd.f32 %v1091, %v1081
    %v1093 = vadd.f32 %v1092, %v1083
    %v1094 = vadd.f32 %v1093, %v1085
    %v1095 = vadd.f32 %v1094, %v1087
    %v1096 = vrot.slane %v1095, 4
    %v1097 = vadd.f32 %v1095, %v1096
    %v1098 = vrot.slane %v1097, 2
    %v1099 = vadd.f32 %v1097, %v1098
    %v1100 = vrot.slane %v1099, 1
    %v1101 = vadd.f32 %v1099, %v1100
    %v1102 = vadd.f32 %v1074, %v1076
    %v1103 = vadd.f32 %v1102, %v1078
    %v1104 = vadd.f32 %v1103, %v1080
    %v1105 = vadd.f32 %v1104, %v1082
    %v1106 = vadd.f32 %v1105, %v1084
    %v1107 = vadd.f32 %v1106, %v1086
    %v1108 = vadd.f32 %v1107, %v1088
    %v1109 = vrot.slane %v1108, 4
    %v1110 = vadd.f32 %v1108, %v1109
    %v1111 = vrot.slane %v1110, 2
    %v1112 = vadd.f32 %v1110, %v1111
    %v1113 = vrot.slane %v1112, 1
    %v1114 = vadd.f32 %v1112, %v1113
    %1116 = vset.pattern.permute.xlu0 0
    %1117 = vperm.xlu0 %1116, %v1032
    %v1118 = vpop.permute.xlu0 %1117
    %v1120 = vlaneseq
    %v1121 = vshrl.u32 %v1120, 7
    %v1122 = vsub.s32 0, %v1121
    %v1123 = vrot.slane %v1118, %v1122
    %v1124 = vadd.f32 %v1101, %v1123
    %v1125 = vadd.f32 %v1114, %v1123
    %1126 = vset.pattern.permute.xlu0 1
    %1127 = vperm.xlu0 %1126, %v1024
    %v1128 = vpop.permute.xlu0 %1127
    %1130 = vset.pattern.permute.xlu0 1
    %1131 = vperm.xlu0 %1130, %v1025
    %v1132 = vpop.permute.xlu0 %1131
    %1134 = vset.pattern.permute.xlu0 1
    %1135 = vperm.xlu0 %1134, %v1026
    %v1136 = vpop.permute.xlu0 %1135
    %1138 = vset.pattern.permute.xlu0 1
    %1139 = vperm.xlu0 %1138, %v1027
    %v1140 = vpop.permute.xlu0 %1139
    %1142 = vset.pattern.permute.xlu0 1
    %1143 = vperm.xlu0 %1142, %v1028
    %v1144 = vpop.permute.xlu0 %1143
    %1146 = vset.pattern.permute.xlu0 1
    %1147 = vperm.xlu0 %1146, %v1029
    %v1148 = vpop.permute.xlu0 %1147
    %1150 = vset.pattern.permute.xlu0 1
    %1151 = vperm.xlu0 %1150, %v1030
    %v1152 = vpop.permute.xlu0 %1151
    %1154 = vset.pattern.permute.xlu0 1
    %1155 = vperm.xlu0 %1154, %v1031
    %v1156 = vpop.permute.xlu0 %1155
    %v1158 = vmul.f32 %v1008, %v1128
    %v1159 = vmul.f32 %v1009, %v1128
    %v1160 = vmul.f32 %v1010, %v1132
    %v1161 = vmul.f32 %v1011, %v1132
    %v1162 = vmul.f32 %v1012, %v1136
    %v1163 = vmul.f32 %v1013, %v1136
    %v1164 = vmul.f32 %v1014, %v1140
    %v1165 = vmul.f32 %v1015, %v1140
    %v1166 = vmul.f32 %v1016, %v1144
    %v1167 = vmul.f32 %v1017, %v1144
    %v1168 = vmul.f32 %v1018, %v1148
    %v1169 = vmul.f32 %v1019, %v1148
    %v1170 = vmul.f32 %v1020, %v1152
    %v1171 = vmul.f32 %v1021, %v1152
    %v1172 = vmul.f32 %v1022, %v1156
    %v1173 = vmul.f32 %v1023, %v1156
    %v1174 = vadd.f32 %v1158, %v1160
    %v1175 = vadd.f32 %v1174, %v1162
    %v1176 = vadd.f32 %v1175, %v1164
    %v1177 = vadd.f32 %v1176, %v1166
    %v1178 = vadd.f32 %v1177, %v1168
    %v1179 = vadd.f32 %v1178, %v1170
    %v1180 = vadd.f32 %v1179, %v1172
    %v1181 = vrot.slane %v1180, 4
    %v1182 = vadd.f32 %v1180, %v1181
    %v1183 = vrot.slane %v1182, 2
    %v1184 = vadd.f32 %v1182, %v1183
    %v1185 = vrot.slane %v1184, 1
    %v1186 = vadd.f32 %v1184, %v1185
    %v1187 = vadd.f32 %v1159, %v1161
    %v1188 = vadd.f32 %v1187, %v1163
    %v1189 = vadd.f32 %v1188, %v1165
    %v1190 = vadd.f32 %v1189, %v1167
    %v1191 = vadd.f32 %v1190, %v1169
    %v1192 = vadd.f32 %v1191, %v1171
    %v1193 = vadd.f32 %v1192, %v1173
    %v1194 = vrot.slane %v1193, 4
    %v1195 = vadd.f32 %v1193, %v1194
    %v1196 = vrot.slane %v1195, 2
    %v1197 = vadd.f32 %v1195, %v1196
    %v1198 = vrot.slane %v1197, 1
    %v1199 = vadd.f32 %v1197, %v1198
    %1200 = vset.pattern.permute.xlu0 1
    %1201 = vperm.xlu0 %1200, %v1032
    %v1202 = vpop.permute.xlu0 %1201
    %v1204 = vlaneseq
    %v1205 = vshrl.u32 %v1204, 7
    %v1206 = vsub.s32 0, %v1205
    %v1207 = vrot.slane %v1202, %v1206
    %v1208 = vadd.f32 %v1186, %v1207
    %v1209 = vadd.f32 %v1199, %v1207
    %v1210 = vmax.f32 %v1124, 0.0
    %v1211 = vmax.f32 %v1125, 0.0
    %vm1212 = vcmask 1040384
    %v1213 = vsel %vm1212, %v1210, %v1208
    %v1214 = vsel %vm1212, %v1211, %v1209
    %v1217 = vcombine.low %v1213, %v1214
    %v1219 = vunpack.c.l.s4 1983009808
    %v1220 = vunpack.c.0.s8 %v1219
    %v1221 = vlaneseq
    %v1222 = vshrl.u32 %v1221, 7
    %v1223 = vsub.s32 %v1220, %v1222
    %v1224 = vrot.slane %v1217, %v1223
    %1226 = vst [vmem:[#allocation2] sm:$0xf] %v1224
    // Predicated region
    $region26: #{tpu_custom_call.1} parent=1 // pred_check
      _
    $region27: #{tpu_custom_call.1} parent=1 // pred_check_branch
      %1228 = sbr.rel (0) target = $region29
    $region28: #{tpu_custom_call.1} parent=1 // pred_region
      %s1230 = ssub.s32 64, 64
      %1231 = vsyncadd [#allocation3], %s1230
      %s1233 = sshll.u32 [#allocation2], 4
      %s1234 = int_to_ptr.vmem [resolvable:$true] %s1233
      %1236 = dma.vmem_to_hbm [thread:$0]  %s1234, 64, %s6, [#allocation3]
    $region29: #{tpu_custom_call.1} parent=1 // pred_fallthru
      _
    // Predicated region
    $region30: #{tpu_custom_call.1} parent=1 // pred_check
      _
    $region31: #{tpu_custom_call.1} parent=1 // pred_check_branch
      %1238 = sbr.rel (0) target = $region33
    $region32: #{tpu_custom_call.1} parent=1 // pred_region
      %1239 = dma.done [#allocation3], 64
    $region33: #{tpu_custom_call.1} parent=1 // pred_fallthru
      _
    %1240 = vsyncpa [#allocation3], 1

</llo_original>
